<compile_context>
chip_gen: v6e
topology: v6e:2x2x1
jax: 0.10.0
libtpu: 0.0.40
codegen_flags: <defaults>
</compile_context>

<pallas_src>
import functools

import jax
import jax.numpy as jnp
from jax.experimental import pallas as pl
from jax.experimental.pallas import tpu as pltpu

GAMMA = 2.0  # module default
# TODO(synk): per-class `weight` (None in this module's default init) would scale ce
# and the mean denominator; not implemented since weight=None here.


def _focal_loss_kernel(logits_ref, target_ref, out_ref, *, n_valid, block_n, gamma):
    """logits_ref: (C, TN) class-on-sublane / batch-on-lane tile.
    target_ref: (1, TN) int32.  out_ref: (1, 1, 1) f32 per-tile partial sum."""
    i = pl.program_id(0)

    x = logits_ref[...].astype(jnp.float32)                   # (C, TN)
    t = target_ref[...]                                       # (1, TN) int32

    # Numerically stable softmax statistics over the class (sublane) axis.
    m = jnp.max(x, axis=0, keepdims=True)                     # (1, TN)
    e = jnp.exp(x - m)                                        # (C, TN)
    sum_e = jnp.sum(e, axis=0, keepdims=True)                 # (1, TN)

    # Target-class logit via a sublane-iota select (no dynamic gather on TPU).
    row = jax.lax.broadcasted_iota(jnp.int32, x.shape, 0)     # (C, TN)
    x_t = jnp.sum(jnp.where(row == t, x, 0.0), axis=0, keepdims=True)   # (1, TN)

    ce = (jnp.log(sum_e) + m) - x_t                           # cross_entropy, reduction='none'
    pt = jnp.exp(x_t - m) * pl.reciprocal(sum_e)              # == exp(-ce); (1,TN) EUP op

    u = 1.0 - pt
    if gamma == 2.0:
        w = u * u                                             # two VPU muls; keeps EUP free
    elif gamma == 1.0:
        w = u
    else:
        w = jnp.power(jnp.maximum(u, 0.0), jnp.float32(gamma))
    focal = w * ce                                            # (1, TN)

    rem = n_valid % block_n
    if rem == 0:
        # Every tile is fully valid: no masking anywhere.
        out_ref[0] = jnp.sum(focal, axis=-1, keepdims=True)
    else:
        last = pl.num_programs(0) - 1

        @pl.when(i != last)
        def _():
            out_ref[0] = jnp.sum(focal, axis=-1, keepdims=True)

        @pl.when(i == last)
        def _():
            # Only the last tile can contain invalid (out-of-bounds) batch lanes.
            # Select (not multiply) so garbage NaN/Inf from the clamped DMA never leaks.
            col = jax.lax.broadcasted_iota(jnp.int32, focal.shape, 1)
            masked = jnp.where(col < rem, focal, 0.0)
            out_ref[0] = jnp.sum(masked, axis=-1, keepdims=True)


def focal_loss(logits, targets, gamma=GAMMA, block_n=None):
    """logits: (N, C) float; targets: (N,) int.  Returns the scalar mean focal loss."""
    n, c = logits.shape

    # TODO(synk): upstream should produce logits already in (C, N) (lane-dense); this
    # standalone transpose is one extra read+write HBM pass on a bandwidth-bound op.
    logits_t = jnp.transpose(logits)                          # (C, N)
    targets_t = targets.astype(jnp.int32).reshape(1, n)       # (1, N)

    if block_n is None:
        # Tile size: as big as a ~16 MiB double-buffered input working set allows.
        # Both the (C, TN) logits block and the (1, TN) targets block pad to 8 sublanes
        # in VMEM, so per-lane cost is (pad8(C) + 8) * 4 bytes.  Cap at 256K lanes.
        c_pad = ((c + 7) // 8) * 8
        bytes_per_lane = (c_pad + 8) * 4
        in_budget = 16 * 1024 * 1024
        tn = (in_budget // (2 * bytes_per_lane)) // 128 * 128
        tn = max(128, min(tn, 256 * 1024))
    else:
        tn = max(128, (block_n // 128) * 128)
    tn = min(tn, ((n + 127) // 128) * 128)

    num_tiles = (n + tn - 1) // tn
    kernel = functools.partial(_focal_loss_kernel,
                               n_valid=n, block_n=tn, gamma=gamma)

    partials = pl.pallas_call(
        kernel,
        out_shape=jax.ShapeDtypeStruct((num_tiles, 1, 1), jnp.float32),
        grid_spec=pltpu.PrefetchScalarGridSpec(
            num_scalar_prefetch=0,
            grid=(num_tiles,),
            in_specs=[
                pl.BlockSpec((c, tn), lambda i: (0, i)),      # logits tile (class x batch)
                pl.BlockSpec((1, tn), lambda i: (0, i)),      # targets tile
            ],
            out_specs=pl.BlockSpec((1, 1, 1), lambda i: (i, 0, 0)),
        ),
        compiler_params=pltpu.CompilerParams(
            # Per-tile partial sums -> no carried state -> grid axis is "parallel"
            # (lets both TensorCores stream HBM concurrently on v7x; neutral elsewhere).
            dimension_semantics=("parallel",),
            vmem_limit_bytes=32 * 1024 * 1024,
        ),
    )(logits_t, targets_t)

    return jnp.sum(partials) / jnp.float32(n)


def focal_loss_ref(logits, targets, gamma=GAMMA):
    # Pure-JAX reference mirroring F.cross_entropy(reduction='none') + focal weighting.
    logp = jax.nn.log_softmax(logits.astype(jnp.float32), axis=-1)
    ce = -jnp.take_along_axis(logp, targets[:, None].astype(jnp.int32), axis=-1)[:, 0]
    pt = jnp.exp(-ce)
    return jnp.mean((1.0 - pt) ** gamma * ce)


if __name__ == "__main__":
    key = jax.random.PRNGKey(0)
    k1, k2, k3, k4 = jax.random.split(key, 4)

    # Small shape matching the module's typical use (batch of nodes, few classes).
    N, C = 16, 8
    logits = jax.random.normal(k1, (N, C), dtype=jnp.float32)
    targets = jax.random.randint(k2, (N,), 0, C, dtype=jnp.int32)
    out = jax.block_until_ready(focal_loss(logits, targets))
    ref = jax.block_until_ready(focal_loss_ref(logits, targets))
    assert jnp.allclose(out, ref, atol=1e-5, rtol=1e-5), (out, ref)

    # Multi-tile + partial-last-tile path (force a small tile to exercise the grid).
    N2, C2 = 4500, 8
    logits2 = jax.random.normal(k3, (N2, C2), dtype=jnp.float32)
    targets2 = jax.random.randint(k4, (N2,), 0, C2, dtype=jnp.int32)
    out2 = jax.block_until_ready(focal_loss(logits2, targets2, block_n=512))
    ref2 = jax.block_until_ready(focal_loss_ref(logits2, targets2))
    assert jnp.allclose(out2, ref2, atol=1e-5, rtol=1e-5), (out2, ref2)

    print("KERNEL_OK")
</pallas_src>

<mosaic_0001>
module attributes {stable_mosaic.version = 11 : i64} {
  func.func @_focal_loss_kernel(%arg0: i32, %arg1: memref<8x128xf32, #tpu.memory_space<vmem>>, %arg2: memref<1x128xi32, #tpu.memory_space<vmem>>, %arg3: memref<1x1x1xf32, #tpu.memory_space<vmem>>) attributes {dimension_semantics = [#tpu.dimension_semantics<parallel>], iteration_bounds = array<i64: 1>, scalar_prefetch = 0 : i64, scratch_operands = 0 : i64, tpu.core_type = #tpu.core_type<tc>, window_params = [{transform_indices = @transform_0, window_bounds = array<i64: 8, 128>}, {transform_indices = @transform_1, window_bounds = array<i64: 1, 128>}, {transform_indices = @transform_2, window_bounds = array<i64: 1, 1, 1>}]} {
    %c0 = arith.constant 0 : index
    %c0_0 = arith.constant 0 : index
    %0 = vector.load %arg1[%c0, %c0_0] : memref<8x128xf32, #tpu.memory_space<vmem>>, vector<8x128xf32>
    %c0_1 = arith.constant 0 : index
    %c0_2 = arith.constant 0 : index
    %1 = vector.load %arg2[%c0_1, %c0_2] : memref<1x128xi32, #tpu.memory_space<vmem>>, vector<1x128xi32>
    %cst = arith.constant dense<0xFF800000> : vector<128xf32>
    %2 = vector.multi_reduction <maximumf>, %0, %cst [0] : vector<8x128xf32> to vector<128xf32>
    %3 = vector.shape_cast %2 : vector<128xf32> to vector<1x128xf32>
    %4 = vector.broadcast %3 : vector<1x128xf32> to vector<8x128xf32>
    %5 = arith.subf %0, %4 : vector<8x128xf32>
    %6 = math.exp %5 : vector<8x128xf32>
    %cst_3 = arith.constant dense<0.000000e+00> : vector<128xf32>
    %7 = vector.multi_reduction <add>, %6, %cst_3 [0] : vector<8x128xf32> to vector<128xf32>
    %8 = vector.shape_cast %7 : vector<128xf32> to vector<1x128xf32>
    %9 = tpu.iota {dimensions = array<i32: 0>} : vector<8x128xi32>
    %10 = vector.broadcast %1 : vector<1x128xi32> to vector<8x128xi32>
    %11 = arith.cmpi eq, %9, %10 : vector<8x128xi32>
    %cst_4 = arith.constant 0.000000e+00 : f32
    %12 = vector.broadcast %cst_4 : f32 to vector<8x128xf32>
    %13 = arith.select %11, %0, %12 : vector<8x128xi1>, vector<8x128xf32>
    %cst_5 = arith.constant dense<0.000000e+00> : vector<128xf32>
    %14 = vector.multi_reduction <add>, %13, %cst_5 [0] : vector<8x128xf32> to vector<128xf32>
    %15 = vector.shape_cast %14 : vector<128xf32> to vector<1x128xf32>
    %16 = math.log %8 : vector<1x128xf32>
    %17 = arith.addf %16, %3 : vector<1x128xf32>
    %18 = arith.subf %17, %15 : vector<1x128xf32>
    %19 = arith.subf %15, %3 : vector<1x128xf32>
    %20 = math.exp %19 : vector<1x128xf32>
    %21 = tpu.reciprocal %8 : vector<1x128xf32> -> vector<1x128xf32>
    %22 = arith.mulf %20, %21 : vector<1x128xf32>
    %cst_6 = arith.constant 1.000000e+00 : f32
    %23 = vector.broadcast %cst_6 : f32 to vector<1x128xf32>
    %24 = arith.subf %23, %22 : vector<1x128xf32>
    %25 = arith.mulf %24, %24 : vector<1x128xf32>
    %26 = arith.mulf %25, %18 : vector<1x128xf32>
    %c0_i32 = arith.constant 0 : i32
    %27 = arith.cmpi ne, %arg0, %c0_i32 : i32
    %28 = arith.extui %27 : i1 to i32
    %c0_i32_7 = arith.constant 0 : i32
    %29 = arith.cmpi ne, %28, %c0_i32_7 : i32
    scf.if %29 {
      %cst_10 = arith.constant dense<0.000000e+00> : vector<1xf32>
      %33 = vector.multi_reduction <add>, %26, %cst_10 [1] : vector<1x128xf32> to vector<1xf32>
      %34 = vector.shape_cast %33 : vector<1xf32> to vector<1x1xf32>
      %c0_11 = arith.constant 0 : index
      %c0_12 = arith.constant 0 : index
      %c0_13 = arith.constant 0 : index
      %35 = vector.load %arg3[%c0_11, %c0_12, %c0_13] : memref<1x1x1xf32, #tpu.memory_space<vmem>>, vector<1x1x1xf32>
      %36 = vector.shape_cast %35 : vector<1x1x1xf32> to vector<1x1xf32>
      %37 = vector.shape_cast %34 : vector<1x1xf32> to vector<1x1x1xf32>
      tpu.vector_store %arg3[%c0_11, %c0_12, %c0_13], %37 {strides = array<i32>} : memref<1x1x1xf32, #tpu.memory_space<vmem>>, vector<1x1x1xf32>,
    } else {
    }
    %c0_i32_8 = arith.constant 0 : i32
    %30 = arith.cmpi eq, %arg0, %c0_i32_8 : i32
    %31 = arith.extui %30 : i1 to i32
    %c0_i32_9 = arith.constant 0 : i32
    %32 = arith.cmpi ne, %31, %c0_i32_9 : i32
    scf.if %32 {
      %33 = tpu.iota {dimensions = array<i32: 1>} : vector<1x128xi32>
      %c16_i32 = arith.constant 16 : i32
      %34 = vector.broadcast %c16_i32 : i32 to vector<1x128xi32>
      %35 = arith.cmpi slt, %33, %34 : vector<1x128xi32>
      %cst_10 = arith.constant 0.000000e+00 : f32
      %36 = vector.broadcast %cst_10 : f32 to vector<1x128xf32>
      %37 = arith.select %35, %26, %36 : vector<1x128xi1>, vector<1x128xf32>
      %cst_11 = arith.constant dense<0.000000e+00> : vector<1xf32>
      %38 = vector.multi_reduction <add>, %37, %cst_11 [1] : vector<1x128xf32> to vector<1xf32>
      %39 = vector.shape_cast %38 : vector<1xf32> to vector<1x1xf32>
      %c0_12 = arith.constant 0 : index
      %c0_13 = arith.constant 0 : index
      %c0_14 = arith.constant 0 : index
      %40 = vector.load %arg3[%c0_12, %c0_13, %c0_14] : memref<1x1x1xf32, #tpu.memory_space<vmem>>, vector<1x1x1xf32>
      %41 = vector.shape_cast %40 : vector<1x1x1xf32> to vector<1x1xf32>
      %42 = vector.shape_cast %39 : vector<1x1xf32> to vector<1x1x1xf32>
      tpu.vector_store %arg3[%c0_12, %c0_13, %c0_14], %42 {strides = array<i32>} : memref<1x1x1xf32, #tpu.memory_space<vmem>>, vector<1x1x1xf32>,
    } else {
    }
    return
  }
  func.func @transform_0(%arg0: i32) -> (i32, i32) {
    %c0_i32 = arith.constant 0 : i32
    %c0_i32_0 = arith.constant 0 : i32
    return %c0_i32, %arg0 : i32, i32
  }
  func.func @transform_1(%arg0: i32) -> (i32, i32) {
    %c0_i32 = arith.constant 0 : i32
    %c0_i32_0 = arith.constant 0 : i32
    return %c0_i32, %arg0 : i32, i32
  }
  func.func @transform_2(%arg0: i32) -> (i32, i32, i32) {
    %c0_i32 = arith.constant 0 : i32
    %c0_i32_0 = arith.constant 0 : i32
    %c0_i32_1 = arith.constant 0 : i32
    return %arg0, %c0_i32, %c0_i32_0 : i32, i32, i32
  }
}

</mosaic_0001>

<llo_original>
// kernel: tpu_custom_call.1
$region0: #{tpu_custom_call.1}
  #allocation0 [shape = 'u32[]', space=smem, size = 0x4, offset = 0x4, fixed_abs, tag = 'smem constant byte address 0x4 - core index']
  #allocation1 [shape = 'u32[144,128]{1,0:T(1,128)}', space=vmem, size = 0x12000, scoped, tag = 'internal scratch']
  %s0 = inlined_call_operand.hbm [shape: f32[8,16], index: 0, kind: input, shape index: {}]
  %s1 = inlined_call_operand.vmem [shape: s32[1,16], index: 1, kind: input, shape index: {}]
  %s2 = inlined_call_operand.hbm [shape: f32[1,1,1], index: 2, kind: output, shape index: {}]
  %s3 = sld [smem:[#allocation0]]
  $region30: #{tpu_custom_call.1} parent=0
    _
  %s5 = ssub.s32 1, %s3
  %s6 = scalar_select 0, %s5, %s3
  $region1: #{tpu_custom_call.1} parent=0
    #allocation2 [shape = 'u8[4096]{0}', space=vmem, size = 0x1000, scoped, tag = 'input window, operand 0, single buffered']
    #allocation3 [shape = 's32[1]{0}', space=sflag, size = 0x4, scoped, tag = 'scoped memory for tpu_custom_call.1']
    #allocation4 [shape = 's32[1]{0}', space=sflag, size = 0x4, scoped, tag = 'scoped memory for tpu_custom_call.1']
    #allocation5 [shape = 'u8[512]{0}', space=vmem, size = 0x400, scoped, tag = 'output window, operand 0, single buffered']
    %7 = vsyncpa [#allocation3], 0
    %8 = vsyncpa [#allocation4], 0
    // Predicated region
    $region2: #{tpu_custom_call.1} parent=1 // pred_check
      _
    $region3: #{tpu_custom_call.1} parent=1 // pred_check_branch
      %10 = sbr.rel (0) target = $region5
    $region4: #{tpu_custom_call.1} parent=1 // pred_region
      %s12 = ssub.s32 128, 128
      %13 = vsyncadd [#allocation3], %s12
      %s15 = sshll.u32 [#allocation2], 4
      %s16 = int_to_ptr.vmem [resolvable:$true] %s15
      %18 = dma.hbm_to_vmem [thread:$0]  %s0, 128, %s16, [#allocation3]
    $region5: #{tpu_custom_call.1} parent=1 // pred_fallthru
      _
    // Predicated region
    $region6: #{tpu_custom_call.1} parent=1 // pred_check
      _
    $region7: #{tpu_custom_call.1} parent=1 // pred_check_branch
      %20 = sbr.rel (0) target = $region9
    $region8: #{tpu_custom_call.1} parent=1 // pred_region
      _
    $region9: #{tpu_custom_call.1} parent=1 // pred_fallthru
      _
    // Predicated region
    $region10: #{tpu_custom_call.1} parent=1 // pred_check
      _
    $region11: #{tpu_custom_call.1} parent=1 // pred_check_branch
      %22 = sbr.rel (0) target = $region13
    $region12: #{tpu_custom_call.1} parent=1 // pred_region
      %23 = dma.done [#allocation3], 128
    $region13: #{tpu_custom_call.1} parent=1 // pred_fallthru
      _
    %v24 = vld [vmem:[#allocation2] sm:$0xff]
    %v25 = vld [vmem:[%s1] sm:$0x1]
    %v26 = vrot.slane %v24, 4
    %v27 = vmax.f32 %v24, %v26
    %v28 = vrot.slane %v27, 2
    %v29 = vmax.f32 %v27, %v28
    %v30 = vrot.slane %v29, 1
    %v31 = vmax.f32 %v29, %v30
    %v32 = vsub.f32 %v24, %v31
    %v33 = vmul.f32 %v32, 1.442695
    %v34 = vpow.pop %v33
    %v35 = vrot.slane %v34, 4
    %v36 = vadd.f32 %v34, %v35
    %v37 = vrot.slane %v36, 2
    %v38 = vadd.f32 %v36, %v37
    %v39 = vrot.slane %v38, 1
    %v40 = vadd.f32 %v38, %v39
    %v41 = vlaneseq
    %v42 = vshrl.u32 %v41, 7
    %v43 = vlaneseq
    %v44 = vshrl.u32 %v43, 7
    %v45 = vsub.s32 0, %v44
    %v46 = vrot.slane %v25, %v45
    %vm47 = vcmp.eq.s32.totalorder %v42, %v46
    %v48 = vsel %vm47, %v24, 0.0
    %v49 = vrot.slane %v48, 4
    %v50 = vadd.f32 %v48, %v49
    %v51 = vrot.slane %v50, 2
    %v52 = vadd.f32 %v50, %v51
    %v53 = vrot.slane %v52, 1
    %v54 = vadd.f32 %v52, %v53
    %v55 = vlog2.pop %v40
    %v56 = vmul.f32 %v55, 0.6931472
    %v57 = vadd.f32 %v56, %v31
    %v58 = vsub.f32 %v57, %v54
    %v59 = vsub.f32 %v54, %v31
    %v60 = vmul.f32 %v59, 1.442695
    %v61 = vpow.pop %v60
    %v62 = vrcp.pop %v40
    %v63 = vmul.f32 %v61, %v62
    %v64 = vsub.f32 1.0, %v63
    %v65 = vmul.f32 %v64, %v64
    %v66 = vmul.f32 %v65, %v58
    %p67 = scmp.ne.s32.totalorder 0, 0
    // Predicated region
    $region14: #{tpu_custom_call.1} parent=1 // pred_check
      %p68 = pneg %p67
    $region15: #{tpu_custom_call.1} parent=1 // pred_check_branch
      %70 = sbr.rel (%p68) target = $region17
    $region16: #{tpu_custom_call.1} parent=1 // pred_region
      %71 = vadd.xlane.f32.xlu0 %v66
      %v72 = vpop.xlane.xlu0 %71
      %vm73 = vcmask 0
      %74 = vst.msk [vmem:[#allocation5] sm:$0x1] %vm73, %v72
    $region17: #{tpu_custom_call.1} parent=1 // pred_fallthru
      _
    %p75 = scmp.eq.s32.totalorder 0, 0
    // Predicated region
    $region18: #{tpu_custom_call.1} parent=1 // pred_check
      %p76 = pneg %p75
    $region19: #{tpu_custom_call.1} parent=1 // pred_check_branch
      %78 = sbr.rel (%p76) target = $region21
    $region20: #{tpu_custom_call.1} parent=1 // pred_region
      %v79 = vlaneseq
      %v80 = vand.u32 %v79, 127
      %vm81 = vcmp.lt.s32.totalorder %v80, 16
      %v82 = vsel %vm81, %v66, 0.0
      %83 = vadd.xlane.f32.xlu0 %v82
      %v84 = vpop.xlane.xlu0 %83
      %vm85 = vcmask 0
      %86 = vst.msk [vmem:[#allocation5] sm:$0x1] %vm85, %v84
    $region21: #{tpu_custom_call.1} parent=1 // pred_fallthru
      _
    // Predicated region
    $region22: #{tpu_custom_call.1} parent=1 // pred_check
      _
    $region23: #{tpu_custom_call.1} parent=1 // pred_check_branch
      %88 = sbr.rel (0) target = $region25
    $region24: #{tpu_custom_call.1} parent=1 // pred_region
      %s90 = ssub.s32 16, 16
      %91 = vsyncadd [#allocation4], %s90
      %s93 = sshll.u32 [#allocation5], 4
      %s94 = int_to_ptr.vmem [resolvable:$true] %s93
      %96 = dma.vmem_to_hbm [thread:$0]  %s94, 16, %s2, [#allocation4]
    $region25: #{tpu_custom_call.1} parent=1 // pred_fallthru
      _
    // Predicated region
    $region26: #{tpu_custom_call.1} parent=1 // pred_check
      _
    $region27: #{tpu_custom_call.1} parent=1 // pred_check_branch
      %98 = sbr.rel (0) target = $region29
    $region28: #{tpu_custom_call.1} parent=1 // pred_region
      %99 = dma.done [#allocation4], 16
    $region29: #{tpu_custom_call.1} parent=1 // pred_fallthru
      _
    %100 = vsyncpa [#allocation3], 1
    %101 = vsyncpa [#allocation4], 1

</llo_original>
